<compile_context>
chip_gen: v5e
topology: v5e:2x2
jax: 0.10.0
libtpu: 0.0.40
codegen_flags: <defaults>
</compile_context>

<pallas_src>
import functools
import math

import jax
import jax.numpy as jnp
from jax.experimental import pallas as pl
from jax.experimental.pallas import tpu as pltpu


def _round_up(v, m):
    return ((v + m - 1) // m) * m


# ----------------------------- fused kernel ---------------------------------
def _stacked_gru_kernel(x_ref, h0_ref, wcat_ref, bias_ref, hn_ref, xh_ref,
                        *, Dp, Hp):
    """One grid step == one GRU layer.

    x_ref   : (Bp, Dp)        padded network input (used only at layer 0)
    h0_ref  : (1, Bp, Hp)     this layer's initial hidden state
    wcat_ref: (1, Dp+Hp, 4Hp) packed weights ([x;h] rows, [r,z,i_n,h_n] cols)
    bias_ref: (1, 1, 4Hp)     packed biases   ([b_r, b_z, b_in, b_hn])
    hn_ref  : (1, Bp, Hp)     output hidden state of this layer
    xh_ref  : (Bp, Dp+Hp)     VMEM scratch carrying the fused [input, h] operand
    """
    l = pl.program_id(0)

    # Layer 0: seed the carried "layer input" columns with the padded x.
    @pl.when(l == 0)
    def _():
        xh_ref[:, 0:Dp] = x_ref[...]

    # This layer's hidden state goes in the tail columns of the fused operand.
    h = h0_ref[0]                                  # (Bp, Hp)
    xh_ref[:, Dp:Dp + Hp] = h

    # Single MXU matmul: (Bp, Dp+Hp) @ (Dp+Hp, 4Hp)  -> all gate pre-acts.
    g = jnp.dot(xh_ref[...], wcat_ref[0],
                preferred_element_type=jnp.float32) + bias_ref[0]

    r = jax.nn.sigmoid(g[:, 0:Hp])                 # lane-aligned gate slices
    z = jax.nn.sigmoid(g[:, Hp:2 * Hp])
    n = jnp.tanh(g[:, 2 * Hp:3 * Hp] + r * g[:, 3 * Hp:4 * Hp])
    h_new = (1.0 - z) * n + z * h

    hn_ref[0] = h_new.astype(hn_ref.dtype)

    # Carry h_new as the next layer's input (dropout == identity, eval mode).
    @pl.when(l + 1 < pl.num_programs(0))
    def _():
        if Dp == Hp:
            xh_ref[:, 0:Dp] = h_new
        else:  # zero-fill the extra input columns when input_size_p > Hp
            xh_ref[:, 0:Dp] = jnp.concatenate(
                [h_new, jnp.zeros((h_new.shape[0], Dp - Hp), h_new.dtype)],
                axis=1)


# ----------------------------- jitted forward -------------------------------
@jax.jit
def stacking_gru_forward(x, h0, wcat, bias):
    """StackingGRUCell.forward with packed parameters.

    x:    (batch, input_size)
    h0:   (num_layers, batch, hidden_size)
    wcat: (num_layers, Dp+Hp, 4*Hp)   from pack_params()
    bias: (num_layers, 1, 4*Hp)       from pack_params()
    returns (output (batch, hidden), hn (num_layers, batch, hidden))
    """
    B, Din = x.shape
    L, _, H = h0.shape
    K = wcat.shape[1]
    Hp = wcat.shape[2] // 4
    Dp = K - Hp
    Bp = _round_up(B, 8)

    # Pad to sublane/lane-dense layout (zeros in padded rows/cols are benign).
    xp = jnp.zeros((Bp, Dp), jnp.float32).at[:B, :Din].set(x)
    h0p = jnp.zeros((L, Bp, Hp), jnp.float32).at[:, :B, :H].set(h0)

    kernel = functools.partial(_stacked_gru_kernel, Dp=Dp, Hp=Hp)

    hn_p = pl.pallas_call(
        kernel,
        out_shape=jax.ShapeDtypeStruct((L, Bp, Hp), jnp.float32),
        grid=(L,),
        in_specs=[
            pl.BlockSpec((Bp, Dp), lambda l: (0, 0)),          # x (resident)
            pl.BlockSpec((1, Bp, Hp), lambda l: (l, 0, 0)),     # h0[l]
            pl.BlockSpec((1, K, 4 * Hp), lambda l: (l, 0, 0)),  # wcat[l]
            pl.BlockSpec((1, 1, 4 * Hp), lambda l: (l, 0, 0)),  # bias[l]
        ],
        out_specs=pl.BlockSpec((1, Bp, Hp), lambda l: (l, 0, 0)),
        scratch_shapes=[pltpu.VMEM((Bp, K), jnp.float32)],      # carried [x,h]
        compiler_params=pltpu.CompilerParams(
            dimension_semantics=("arbitrary",)),
    )(xp, h0p, wcat, bias)

    hn = hn_p[:, :B, :H]
    return hn[-1], hn


# -------------------- one-time parameter packing (init) ---------------------
def pack_params(params, input_size, hidden_size):
    """Pack per-layer (w_ih, w_hh, b_ih, b_hh) into the fused kernel layout.

    Output columns of wcat (width 4*Hp, Hp = pad(H, 128)):
      [0:Hp)    r gate  : rows [0:Dp) = W_ir^T, rows [Dp:Dp+H) = W_hr^T
      [Hp:2Hp)  z gate  : rows [0:Dp) = W_iz^T, rows [Dp:Dp+H) = W_hz^T
      [2Hp:3Hp) i_n     : rows [0:Dp) = W_in^T  (hidden rows zero)
      [3Hp:4Hp) h_n     : rows [Dp:Dp+H) = W_hn^T (input rows zero)
    Biases: [b_ir+b_hr, b_iz+b_hz, b_in, b_hn].
    """
    L = len(params)
    H = hidden_size
    Hp = _round_up(H, 128)
    Dp = max(_round_up(input_size, 128), Hp)
    K = Dp + Hp
    wcat = jnp.zeros((L, K, 4 * Hp), jnp.float32)
    bias = jnp.zeros((L, 1, 4 * Hp), jnp.float32)
    for l, (w_ih, w_hh, b_ih, b_hh) in enumerate(params):
        Din = w_ih.shape[1]
        W_ir, W_iz, W_in = w_ih[:H], w_ih[H:2 * H], w_ih[2 * H:]
        W_hr, W_hz, W_hn = w_hh[:H], w_hh[H:2 * H], w_hh[2 * H:]
        b_ir, b_iz, b_in = b_ih[:H], b_ih[H:2 * H], b_ih[2 * H:]
        b_hr, b_hz, b_hn = b_hh[:H], b_hh[H:2 * H], b_hh[2 * H:]
        wcat = wcat.at[l, :Din, 0:H].set(W_ir.T)
        wcat = wcat.at[l, Dp:Dp + H, 0:H].set(W_hr.T)
        wcat = wcat.at[l, :Din, Hp:Hp + H].set(W_iz.T)
        wcat = wcat.at[l, Dp:Dp + H, Hp:Hp + H].set(W_hz.T)
        wcat = wcat.at[l, :Din, 2 * Hp:2 * Hp + H].set(W_in.T)
        wcat = wcat.at[l, Dp:Dp + H, 3 * Hp:3 * Hp + H].set(W_hn.T)
        bias = bias.at[l, 0, 0:H].set(b_ir + b_hr)
        bias = bias.at[l, 0, Hp:Hp + H].set(b_iz + b_hz)
        bias = bias.at[l, 0, 2 * Hp:2 * Hp + H].set(b_in)
        bias = bias.at[l, 0, 3 * Hp:3 * Hp + H].set(b_hn)
    return wcat, bias


# ---------------- pure-JAX reference (for correctness check) ----------------
def _gru_cell_ref(x, h, w_ih, w_hh, b_ih, b_hh):
    H = h.shape[-1]
    gi = x @ w_ih.T + b_ih
    gh = h @ w_hh.T + b_hh
    i_r, i_z, i_n = gi[:, :H], gi[:, H:2 * H], gi[:, 2 * H:]
    h_r, h_z, h_n = gh[:, :H], gh[:, H:2 * H], gh[:, 2 * H:]
    r = jax.nn.sigmoid(i_r + h_r)
    z = jax.nn.sigmoid(i_z + h_z)
    n = jnp.tanh(i_n + r * h_n)
    return (1.0 - z) * n + z * h


def stacking_gru_ref(x, h0, params):
    hn = []
    output = x
    for i in range(h0.shape[0]):
        w_ih, w_hh, b_ih, b_hh = params[i]
        hn_i = _gru_cell_ref(output, h0[i], w_ih, w_hh, b_ih, b_hh)
        hn.append(hn_i)
        output = hn_i
    return output, jnp.stack(hn)


# ---------------- deterministic parameter init (PyTorch-style uniform) -------
def init_params(key, input_size, hidden_size, num_layers):
    k = 1.0 / math.sqrt(hidden_size)
    params = []
    for i in range(num_layers):
        in_dim = input_size if i == 0 else hidden_size
        key, k1, k2, k3, k4 = jax.random.split(key, 5)
        w_ih = jax.random.uniform(k1, (3 * hidden_size, in_dim),
                                  jnp.float32, -k, k)
        w_hh = jax.random.uniform(k2, (3 * hidden_size, hidden_size),
                                  jnp.float32, -k, k)
        b_ih = jax.random.uniform(k3, (3 * hidden_size,), jnp.float32, -k, k)
        b_hh = jax.random.uniform(k4, (3 * hidden_size,), jnp.float32, -k, k)
        params.append((w_ih, w_hh, b_ih, b_hh))
    return params


if __name__ == "__main__":
    batch = 2
    input_size = 16
    hidden_size = 32
    num_layers = 3

    root = jax.random.PRNGKey(0)
    params = init_params(root, input_size, hidden_size, num_layers)
    wcat, bias = pack_params(params, input_size, hidden_size)  # one-time

    kx, kh = jax.random.split(jax.random.fold_in(root, 123))
    x = jax.random.normal(kx, (batch, input_size), jnp.float32)
    h0 = jax.random.normal(kh, (num_layers, batch, hidden_size), jnp.float32)

    output, hn = stacking_gru_forward(x, h0, wcat, bias)
    output, hn = jax.block_until_ready((output, hn))

    out_ref, hn_ref = stacking_gru_ref(x, h0, params)
    assert output.shape == (batch, hidden_size)
    assert hn.shape == (num_layers, batch, hidden_size)
    assert jnp.allclose(output, out_ref, atol=1e-5, rtol=1e-5)
    assert jnp.allclose(hn, hn_ref, atol=1e-5, rtol=1e-5)

    print("KERNEL_OK")
</pallas_src>

<mosaic_0001>
module attributes {stable_mosaic.version = 11 : i64} {
  func.func @_stacked_gru_kernel(%arg0: i32, %arg1: memref<8x128xf32, #tpu.memory_space<vmem>>, %arg2: memref<1x8x128xf32, #tpu.memory_space<vmem>>, %arg3: memref<1x256x512xf32, #tpu.memory_space<vmem>>, %arg4: memref<1x1x512xf32, #tpu.memory_space<vmem>>, %arg5: memref<1x8x128xf32, #tpu.memory_space<vmem>>, %arg6: memref<8x256xf32, #tpu.memory_space<vmem>>) attributes {dimension_semantics = [#tpu.dimension_semantics<arbitrary>], iteration_bounds = array<i64: 3>, scalar_prefetch = 0 : i64, scratch_operands = 1 : i64, tpu.core_type = #tpu.core_type<tc>, window_params = [{pipeline_mode = #tpu.pipeline_mode<synchronous>, transform_indices = @transform_0, window_bounds = array<i64: 8, 128>}, {transform_indices = @transform_1, window_bounds = array<i64: 1, 8, 128>}, {transform_indices = @transform_2, window_bounds = array<i64: 1, 256, 512>}, {transform_indices = @transform_3, window_bounds = array<i64: 1, 1, 512>}, {transform_indices = @transform_4, window_bounds = array<i64: 1, 8, 128>}]} {
    %c0_i32 = arith.constant 0 : i32
    %0 = arith.cmpi eq, %arg0, %c0_i32 : i32
    %1 = arith.extui %0 : i1 to i32
    %c0_i32_0 = arith.constant 0 : i32
    %2 = arith.cmpi ne, %1, %c0_i32_0 : i32
    scf.if %2 {
      %c0_19 = arith.constant 0 : index
      %c0_20 = arith.constant 0 : index
      %43 = vector.load %arg1[%c0_19, %c0_20] : memref<8x128xf32, #tpu.memory_space<vmem>>, vector<8x128xf32>
      %c0_21 = arith.constant 0 : index
      %c0_22 = arith.constant 0 : index
      %44 = vector.load %arg6[%c0_21, %c0_22] : memref<8x256xf32, #tpu.memory_space<vmem>>, vector<8x128xf32>
      tpu.vector_store %arg6[%c0_21, %c0_22], %43 {strides = array<i32>} : memref<8x256xf32, #tpu.memory_space<vmem>>, vector<8x128xf32>,
    } else {
    }
    %c0 = arith.constant 0 : index
    %c0_1 = arith.constant 0 : index
    %c0_2 = arith.constant 0 : index
    %3 = vector.load %arg2[%c0, %c0_1, %c0_2] : memref<1x8x128xf32, #tpu.memory_space<vmem>>, vector<1x8x128xf32>
    %4 = vector.shape_cast %3 : vector<1x8x128xf32> to vector<8x128xf32>
    %c0_3 = arith.constant 0 : index
    %c128 = arith.constant 128 : index
    %5 = vector.load %arg6[%c0_3, %c128] : memref<8x256xf32, #tpu.memory_space<vmem>>, vector<8x128xf32>
    tpu.vector_store %arg6[%c0_3, %c128], %4 {strides = array<i32>} : memref<8x256xf32, #tpu.memory_space<vmem>>, vector<8x128xf32>,
    %c0_4 = arith.constant 0 : index
    %c0_5 = arith.constant 0 : index
    %6 = vector.load %arg6[%c0_4, %c0_5] : memref<8x256xf32, #tpu.memory_space<vmem>>, vector<8x256xf32>
    %c0_6 = arith.constant 0 : index
    %c0_7 = arith.constant 0 : index
    %c0_8 = arith.constant 0 : index
    %7 = vector.load %arg3[%c0_6, %c0_7, %c0_8] : memref<1x256x512xf32, #tpu.memory_space<vmem>>, vector<1x256x512xf32>
    %8 = vector.shape_cast %7 : vector<1x256x512xf32> to vector<256x512xf32>
    %cst = arith.constant dense<0.000000e+00> : vector<8x512xf32>
    %9 = tpu.matmul %6, %8, %cst {dimension_numbers = #tpu.dot_dimension_numbers<[1], [0], [0], [1], [0, 0, 1, 1], [], []>} : vector<8x256xf32>, vector<256x512xf32>, vector<8x512xf32> -> vector<8x512xf32>
    %c0_9 = arith.constant 0 : index
    %c0_10 = arith.constant 0 : index
    %c0_11 = arith.constant 0 : index
    %10 = vector.load %arg4[%c0_9, %c0_10, %c0_11] : memref<1x1x512xf32, #tpu.memory_space<vmem>>, vector<1x1x512xf32>
    %11 = vector.shape_cast %10 : vector<1x1x512xf32> to vector<1x512xf32>
    %12 = vector.broadcast %11 : vector<1x512xf32> to vector<8x512xf32>
    %13 = arith.addf %9, %12 : vector<8x512xf32>
    %14 = vector.extract_strided_slice %13 {offsets = [0, 0], sizes = [8, 128], strides = [1, 1]} : vector<8x512xf32> to vector<8x128xf32>
    %15 = arith.negf %14 : vector<8x128xf32>
    %16 = math.exp %15 : vector<8x128xf32>
    %cst_12 = arith.constant 1.000000e+00 : f32
    %17 = vector.broadcast %cst_12 : f32 to vector<8x128xf32>
    %18 = arith.addf %17, %16 : vector<8x128xf32>
    %19 = arith.divf %17, %18 : vector<8x128xf32>
    %20 = vector.extract_strided_slice %13 {offsets = [0, 128], sizes = [8, 128], strides = [1, 1]} : vector<8x512xf32> to vector<8x128xf32>
    %21 = arith.negf %20 : vector<8x128xf32>
    %22 = math.exp %21 : vector<8x128xf32>
    %cst_13 = arith.constant 1.000000e+00 : f32
    %23 = vector.broadcast %cst_13 : f32 to vector<8x128xf32>
    %24 = arith.addf %23, %22 : vector<8x128xf32>
    %25 = arith.divf %23, %24 : vector<8x128xf32>
    %26 = vector.extract_strided_slice %13 {offsets = [0, 256], sizes = [8, 128], strides = [1, 1]} : vector<8x512xf32> to vector<8x128xf32>
    %27 = vector.extract_strided_slice %13 {offsets = [0, 384], sizes = [8, 128], strides = [1, 1]} : vector<8x512xf32> to vector<8x128xf32>
    %28 = arith.mulf %19, %27 : vector<8x128xf32>
    %29 = arith.addf %26, %28 : vector<8x128xf32>
    %30 = math.tanh %29 : vector<8x128xf32>
    %cst_14 = arith.constant 1.000000e+00 : f32
    %31 = vector.broadcast %cst_14 : f32 to vector<8x128xf32>
    %32 = arith.subf %31, %25 : vector<8x128xf32>
    %33 = arith.mulf %32, %30 : vector<8x128xf32>
    %34 = arith.mulf %25, %4 : vector<8x128xf32>
    %35 = arith.addf %33, %34 : vector<8x128xf32>
    %c0_15 = arith.constant 0 : index
    %c0_16 = arith.constant 0 : index
    %c0_17 = arith.constant 0 : index
    %36 = vector.load %arg5[%c0_15, %c0_16, %c0_17] : memref<1x8x128xf32, #tpu.memory_space<vmem>>, vector<1x8x128xf32>
    %37 = vector.shape_cast %36 : vector<1x8x128xf32> to vector<8x128xf32>
    %38 = vector.shape_cast %35 : vector<8x128xf32> to vector<1x8x128xf32>
    tpu.vector_store %arg5[%c0_15, %c0_16, %c0_17], %38 {strides = array<i32>} : memref<1x8x128xf32, #tpu.memory_space<vmem>>, vector<1x8x128xf32>,
    %c1_i32 = arith.constant 1 : i32
    %39 = arith.addi %arg0, %c1_i32 : i32
    %c3_i32 = arith.constant 3 : i32
    %40 = arith.cmpi slt, %39, %c3_i32 : i32
    %41 = arith.extui %40 : i1 to i32
    %c0_i32_18 = arith.constant 0 : i32
    %42 = arith.cmpi ne, %41, %c0_i32_18 : i32
    scf.if %42 {
      %c0_19 = arith.constant 0 : index
      %c0_20 = arith.constant 0 : index
      %43 = vector.load %arg6[%c0_19, %c0_20] : memref<8x256xf32, #tpu.memory_space<vmem>>, vector<8x128xf32>
      tpu.vector_store %arg6[%c0_19, %c0_20], %35 {strides = array<i32>} : memref<8x256xf32, #tpu.memory_space<vmem>>, vector<8x128xf32>,
    } else {
    }
    return
  }
  func.func @transform_0(%arg0: i32) -> (i32, i32) {
    %c0_i32 = arith.constant 0 : i32
    %c0_i32_0 = arith.constant 0 : i32
    %c0_i32_1 = arith.constant 0 : i32
    return %c0_i32, %c0_i32_0 : i32, i32
  }
  func.func @transform_1(%arg0: i32) -> (i32, i32, i32) {
    %c0_i32 = arith.constant 0 : i32
    %c0_i32_0 = arith.constant 0 : i32
    %c0_i32_1 = arith.constant 0 : i32
    return %arg0, %c0_i32, %c0_i32_0 : i32, i32, i32
  }
  func.func @transform_2(%arg0: i32) -> (i32, i32, i32) {
    %c0_i32 = arith.constant 0 : i32
    %c0_i32_0 = arith.constant 0 : i32
    %c0_i32_1 = arith.constant 0 : i32
    return %arg0, %c0_i32, %c0_i32_0 : i32, i32, i32
  }
  func.func @transform_3(%arg0: i32) -> (i32, i32, i32) {
    %c0_i32 = arith.constant 0 : i32
    %c0_i32_0 = arith.constant 0 : i32
    %c0_i32_1 = arith.constant 0 : i32
    return %arg0, %c0_i32, %c0_i32_0 : i32, i32, i32
  }
  func.func @transform_4(%arg0: i32) -> (i32, i32, i32) {
    %c0_i32 = arith.constant 0 : i32
    %c0_i32_0 = arith.constant 0 : i32
    %c0_i32_1 = arith.constant 0 : i32
    return %arg0, %c0_i32, %c0_i32_0 : i32, i32, i32
  }
}

</mosaic_0001>

<llo_original>
// kernel: stacking_gru_forward.1
$region0: #{stacking_gru_forward.1}
  #allocation0 [shape = 'u32[]', space=smem, size = 0x4, offset = 0x4, fixed_abs, tag = 'smem constant byte address 0x4 - core index']
  #allocation1 [shape = 'u32[72,128]{1,0:T(1,128)}', space=vmem, size = 0x9000, scoped, tag = 'internal scratch']
  #allocation2 [shape = 'f32[8,256]{1,0:T(8,128)}', space=vmem, size = 0x2000, scoped, tag = 'scratch operand']
  %s0 = inlined_call_operand.vmem [shape: f32[8,128], index: 0, kind: input, shape index: {}]
  %s1 = inlined_call_operand.vmem [shape: f32[3,8,128], index: 1, kind: input, shape index: {}]
  %s2 = inlined_call_operand.hbm [shape: f32[3,256,512], index: 2, kind: input, shape index: {}]
  %s3 = inlined_call_operand.hbm [shape: f32[3,1,512], index: 3, kind: input, shape index: {}]
  %s4 = inlined_call_operand.vmem [shape: f32[3,8,128], index: 4, kind: output, shape index: {}]
  %s5 = sld [smem:[#allocation0]]
  $region65: #{stacking_gru_forward.1} parent=0
    _
  %s7 = ssub.s32 1, %s5
  %s8 = scalar_select 0, %s7, %s5
  $region1: #{stacking_gru_forward.1} parent=0
    #allocation3 [shape = 'u8[1048576]{0}', space=vmem, size = 0x100000, scoped, tag = 'input window, operand 2']
    #allocation4 [shape = 's32[2]{0}', space=sflag, size = 0x8, scoped, tag = 'scoped memory for stacking_gru_forward.1']
    #allocation5 [shape = 'u8[4096]{0}', space=vmem, size = 0x1000, scoped, tag = 'input window, operand 3']
    #allocation6 [shape = 's32[2]{0}', space=sflag, size = 0x8, scoped, tag = 'scoped memory for stacking_gru_forward.1']
    %9 = vsyncpa [#allocation4], 0
    %s10 = scalar_lea.sflag [#allocation4], 1
    %11 = vsyncpa %s10, 0
    %12 = vsyncpa [#allocation6], 0
    %s13 = scalar_lea.sflag [#allocation6], 1
    %14 = vsyncpa %s13, 0
    loop: start=0, step=1, limit=5
    $region2: #{stacking_gru_forward.1} parent=1 // loop_pre_header
      _
    $region3: #{stacking_gru_forward.1} parent=1 // loop_header
      %s16 = sphi 0, %s20
      %p17 = scmp.ge.s32.totalorder %s16, 5
      %s24 = sphi 0, %s24
      %s26 = sphi 0, %s24
      %s27 = sphi 0, %s26
      %s41 = sphi 0, %s27
      %s47 = sphi 0, %s49
      %s50 = sphi 0, %s47
      %s51 = sphi 0, %s50
      %s67 = sphi 0, %s51
      %s73 = sphi 0, %s75
      %s76 = sphi 0, %s73
      %s77 = sphi 0, %s76
      %s93 = sphi 0, %s77
      %s99 = sphi 0, %s101
      %s102 = sphi 0, %s99
      %s103 = sphi 0, %s102
      %s119 = sphi 0, %s103
      %s125 = sphi 0, %s127
      %s128 = sphi 0, %s125
      %s129 = sphi 0, %s128
      %s145 = sphi 0, %s129
    $region4: #{stacking_gru_forward.1} parent=1 // loop_header_branch
      %19 = sbr.rel (%p17) target = $region8
    $region5: #{stacking_gru_forward.1} parent=1 // loop_body
      %s21 = ssub.s32 %s16, 1
      %s22 = ssub.s32 %s16, 2
      %s23 = sadd.s32 %s16, 1
      %s25 = sadd.s32 %s24, 1
      %p28 = scmp.eq.s32.totalorder %s16, 2
      %p29 = scmp.ne.s32.totalorder %s24, %s26
      %p30 = scmp.eq.s32.totalorder %s16, 0
      %p31 = por %p29, %p30
      %p32 = scmp.ne.s32.totalorder %s24, %s26
      %p33 = scmp.eq.s32.totalorder %s21, 2
      %p34 = por %p32, %p33
      %p35 = scmp.ne.s32.totalorder %s26, %s27
      %p36 = scmp.eq.s32.totalorder %s21, 0
      %p37 = por %p35, %p36
      %p38 = scmp.ne.s32.totalorder %s26, %s27
      %p39 = scmp.eq.s32.totalorder %s22, 2
      %p40 = por %p38, %p39
      %p42 = scmp.ne.s32.totalorder %s27, %s41
      %p43 = scmp.eq.s32.totalorder %s22, 0
      %p44 = por %p42, %p43
      %s45 = ssub.s32 %s16, %s23
      %p46 = scmp.eq.s32.totalorder %s45, 0
      %s48 = sadd.s32 %s47, 1
      %s49 = scalar_select %p46, %s47, %s48
      %p52 = pneg %p46
      %p53 = scmp.eq.s32.totalorder %s16, 2
      %p54 = por %p52, %p53
      %p55 = scmp.ne.s32.totalorder %s47, %s50
      %p56 = scmp.eq.s32.totalorder %s16, 0
      %p57 = por %p55, %p56
      %p58 = scmp.ne.s32.totalorder %s47, %s50
      %p59 = scmp.eq.s32.totalorder %s21, 2
      %p60 = por %p58, %p59
      %p61 = scmp.ne.s32.totalorder %s50, %s51
      %p62 = scmp.eq.s32.totalorder %s21, 0
      %p63 = por %p61, %p62
      %p64 = scmp.ne.s32.totalorder %s50, %s51
      %p65 = scmp.eq.s32.totalorder %s22, 2
      %p66 = por %p64, %p65
      %p68 = scmp.ne.s32.totalorder %s51, %s67
      %p69 = scmp.eq.s32.totalorder %s22, 0
      %p70 = por %p68, %p69
      %s71 = ssub.s32 %s16, %s23
      %p72 = scmp.eq.s32.totalorder %s71, 0
      %s74 = sadd.s32 %s73, 1
      %s75 = scalar_select %p72, %s73, %s74
      %p78 = pneg %p72
      %p79 = scmp.eq.s32.totalorder %s16, 2
      %p80 = por %p78, %p79
      %p81 = scmp.ne.s32.totalorder %s73, %s76
      %p82 = scmp.eq.s32.totalorder %s16, 0
      %p83 = por %p81, %p82
      %p84 = scmp.ne.s32.totalorder %s73, %s76
      %p85 = scmp.eq.s32.totalorder %s21, 2
      %p86 = por %p84, %p85
      %p87 = scmp.ne.s32.totalorder %s76, %s77
      %p88 = scmp.eq.s32.totalorder %s21, 0
      %p89 = por %p87, %p88
      %p90 = scmp.ne.s32.totalorder %s76, %s77
      %p91 = scmp.eq.s32.totalorder %s22, 2
      %p92 = por %p90, %p91
      %p94 = scmp.ne.s32.totalorder %s77, %s93
      %p95 = scmp.eq.s32.totalorder %s22, 0
      %p96 = por %p94, %p95
      %s97 = ssub.s32 %s16, %s23
      %p98 = scmp.eq.s32.totalorder %s97, 0
      %s100 = sadd.s32 %s99, 1
      %s101 = scalar_select %p98, %s99, %s100
      %p104 = pneg %p98
      %p105 = scmp.eq.s32.totalorder %s16, 2
      %p106 = por %p104, %p105
      %p107 = scmp.ne.s32.totalorder %s99, %s102
      %p108 = scmp.eq.s32.totalorder %s16, 0
      %p109 = por %p107, %p108
      %p110 = scmp.ne.s32.totalorder %s99, %s102
      %p111 = scmp.eq.s32.totalorder %s21, 2
      %p112 = por %p110, %p111
      %p113 = scmp.ne.s32.totalorder %s102, %s103
      %p114 = scmp.eq.s32.totalorder %s21, 0
      %p115 = por %p113, %p114
      %p116 = scmp.ne.s32.totalorder %s102, %s103
      %p117 = scmp.eq.s32.totalorder %s22, 2
      %p118 = por %p116, %p117
      %p120 = scmp.ne.s32.totalorder %s103, %s119
      %p121 = scmp.eq.s32.totalorder %s22, 0
      %p122 = por %p120, %p121
      %s123 = ssub.s32 %s16, %s23
      %p124 = scmp.eq.s32.totalorder %s123, 0
      %s126 = sadd.s32 %s125, 1
      %s127 = scalar_select %p124, %s125, %s126
      %p130 = pneg %p124
      %p131 = scmp.eq.s32.totalorder %s16, 2
      %p132 = por %p130, %p131
      %p133 = scmp.ne.s32.totalorder %s125, %s128
      %p134 = scmp.eq.s32.totalorder %s16, 0
      %p135 = por %p133, %p134
      %p136 = scmp.ne.s32.totalorder %s125, %s128
      %p137 = scmp.eq.s32.totalorder %s21, 2
      %p138 = por %p136, %p137
      %p139 = scmp.ne.s32.totalorder %s128, %s129
      %p140 = scmp.eq.s32.totalorder %s21, 0
      %p141 = por %p139, %p140
      %p142 = scmp.ne.s32.totalorder %s128, %s129
      %p143 = scmp.eq.s32.totalorder %s22, 2
      %p144 = por %p142, %p143
      %p146 = scmp.ne.s32.totalorder %s129, %s145
      %p147 = scmp.eq.s32.totalorder %s22, 0
      %p148 = por %p146, %p147
      %p149 = scmp.le.s32.totalorder 1, %s16
      %p150 = scmp.lt.s32.totalorder %s16, 4
      %p151 = pnand %p149, %p150
      %p152 = pneg %p151
      // Predicated region
      $region9: #{stacking_gru_forward.1} parent=5 // pred_check
        _
      $region10: #{stacking_gru_forward.1} parent=5 // pred_check_branch
        %154 = sbr.rel (%p151) target = $region12
      $region11: #{stacking_gru_forward.1} parent=5 // pred_region
        %s155 = ssub.s32 %s16, 1
        // Predicated region
        $region13: #{stacking_gru_forward.1} parent=11 // pred_check
          %p156 = pneg %p37
        $region14: #{stacking_gru_forward.1} parent=11 // pred_check_branch
          %158 = sbr.rel (%p156) target = $region16
        $region15: #{stacking_gru_forward.1} parent=11 // pred_region
          _
        $region16: #{stacking_gru_forward.1} parent=11 // pred_fallthru
          _
      $region12: #{stacking_gru_forward.1} parent=5 // pred_fallthru
        _
      %p159 = scmp.lt.s32.totalorder %s16, 3
      // Predicated region
      $region17: #{stacking_gru_forward.1} parent=5 // pred_check
        %p160 = pneg %p159
      $region18: #{stacking_gru_forward.1} parent=5 // pred_check_branch
        %162 = sbr.rel (%p160) target = $region20
      $region19: #{stacking_gru_forward.1} parent=5 // pred_region
        // Predicated region
        $region21: #{stacking_gru_forward.1} parent=19 // pred_check
          %p163 = pneg %p57
        $region22: #{stacking_gru_forward.1} parent=19 // pred_check_branch
          %165 = sbr.rel (%p163) target = $region24
        $region23: #{stacking_gru_forward.1} parent=19 // pred_region
          %p166 = scmp.lt.s32.totalorder %s16, 2
          %s167 = scalar_select %p166, %s16, 2
          %s168 = smul.addr %s167, 8
          %s169 = scalar_lea.vmem %s1, %s168
        $region24: #{stacking_gru_forward.1} parent=19 // pred_fallthru
          _
        // Predicated region
        $region25: #{stacking_gru_forward.1} parent=19 // pred_check
          %p170 = pneg %p83
        $region26: #{stacking_gru_forward.1} parent=19 // pred_check_branch
          %172 = sbr.rel (%p170) target = $region28
        $region27: #{stacking_gru_forward.1} parent=19 // pred_region
          %s173 = sand.u32 %s73, 1
          %s174 = scalar_lea.sflag [#allocation4], %s173
          %s175 = sand.u32 %s73, 1
          %s176 = smul.addr %s175, 1024
          %s177 = scalar_lea.vmem [#allocation3], %s176
          %179 = vsyncadd %s174, 0
          %s180 = smul.addr %s16, 128
          %s181 = smul.addr %s180, 8
          %s182 = scalar_lea.hbm %s2, %s181
          %s183 = sshll.u32 %s182, 4
          %s184 = int_to_ptr.hbm [resolvable:$true] %s183
          %s185 = sshll.u32 %s177, 4
          %s186 = int_to_ptr.vmem [resolvable:$true] %s185
          %191 = dma.hbm_to_vmem [thread:$0]  %s184, 16384, %s186, %s174, 512, 512, 32
        $region28: #{stacking_gru_forward.1} parent=19 // pred_fallthru
          _
        // Predicated region
        $region29: #{stacking_gru_forward.1} parent=19 // pred_check
          %p192 = pneg %p109
        $region30: #{stacking_gru_forward.1} parent=19 // pred_check_branch
          %194 = sbr.rel (%p192) target = $region32
        $region31: #{stacking_gru_forward.1} parent=19 // pred_region
          %s195 = sand.u32 %s99, 1
          %s196 = scalar_lea.sflag [#allocation6], %s195
          %s197 = sand.u32 %s99, 1
          %s198 = smul.addr %s197, 4
          %s199 = scalar_lea.vmem [#allocation5], %s198
          %201 = vsyncadd %s196, 0
          %s202 = smul.addr %s16, 4
          %s203 = scalar_lea.hbm %s3, %s202
          %s205 = sshll.u32 %s203, 4
          %s206 = int_to_ptr.hbm [resolvable:$true] %s205
          %s207 = sshll.u32 %s199, 4
          %s208 = int_to_ptr.vmem [resolvable:$true] %s207
          %210 = dma.hbm_to_vmem [thread:$0]  %s206, 64, %s208, %s196
        $region32: #{stacking_gru_forward.1} parent=19 // pred_fallthru
          _
      $region20: #{stacking_gru_forward.1} parent=5 // pred_fallthru
        _
      %p211 = scmp.le.s32.totalorder 1, %s16
      %p212 = scmp.lt.s32.totalorder %s16, 4
      %p213 = pnand %p211, %p212
      %p214 = pneg %p213
      // Predicated region
      $region33: #{stacking_gru_forward.1} parent=5 // pred_check
        _
      $region34: #{stacking_gru_forward.1} parent=5 // pred_check_branch
        %216 = sbr.rel (%p213) target = $region36
      $region35: #{stacking_gru_forward.1} parent=5 // pred_region
        %s217 = ssub.s32 %s16, 1
        %s218 = sand.u32 %s76, 1
        %s219 = scalar_lea.sflag [#allocation4], %s218
        %s220 = sand.u32 %s76, 1
        %s221 = smul.addr %s220, 1024
        %s222 = scalar_lea.vmem [#allocation3], %s221
        // Predicated region
        $region37: #{stacking_gru_forward.1} parent=35 // pred_check
          %p223 = pneg %p89
        $region38: #{stacking_gru_forward.1} parent=35 // pred_check_branch
          %225 = sbr.rel (%p223) target = $region40
        $region39: #{stacking_gru_forward.1} parent=35 // pred_region
          %227 = dma.done %s219, 16384
        $region40: #{stacking_gru_forward.1} parent=35 // pred_fallthru
          _
        %s228 = sand.u32 %s102, 1
        %s229 = scalar_lea.sflag [#allocation6], %s228
        %s230 = sand.u32 %s102, 1
        %s231 = smul.addr %s230, 4
        %s232 = scalar_lea.vmem [#allocation5], %s231
        // Predicated region
        $region41: #{stacking_gru_forward.1} parent=35 // pred_check
          %p233 = pneg %p115
        $region42: #{stacking_gru_forward.1} parent=35 // pred_check_branch
          %235 = sbr.rel (%p233) target = $region44
        $region43: #{stacking_gru_forward.1} parent=35 // pred_region
          %237 = dma.done %s229, 64
        $region44: #{stacking_gru_forward.1} parent=35 // pred_fallthru
          _
        %p238 = pneg %p37
        %p239 = pneg %p34
        %p240 = scmp.lt.s32.totalorder %s21, 2
        %s241 = scalar_select %p240, %s21, 2
        %s242 = smul.addr %s241, 8
        %s243 = scalar_lea.vmem %s1, %s242
        %p244 = pneg %p63
        %p245 = pneg %p60
        %s246 = sand.u32 %s76, 1
        %s247 = scalar_lea.sflag [#allocation4], %s246
        %s248 = sand.u32 %s76, 1
        %s249 = smul.addr %s248, 1024
        %s250 = scalar_lea.vmem [#allocation3], %s249
        %p251 = pneg %p89
        %p252 = pneg %p86
        %s253 = sand.u32 %s102, 1
        %s254 = scalar_lea.sflag [#allocation6], %s253
        %s255 = sand.u32 %s102, 1
        %s256 = smul.addr %s255, 4
        %s257 = scalar_lea.vmem [#allocation5], %s256
        %p258 = pneg %p115
        %p259 = pneg %p112
        %p260 = pneg %p141
        %p261 = pneg %p138
        %p262 = scmp.lt.s32.totalorder %s21, 2
        %s263 = scalar_select %p262, %s21, 2
        %s264 = smul.addr %s263, 8
        %s265 = scalar_lea.vmem %s4, %s264
        %p266 = scmp.lt.s32.totalorder %s21, 2
        %s267 = scalar_select %p266, %s21, 2
        %s268 = smul.addr %s267, 8
        %s269 = scalar_lea.vmem %s1, %s268
        %p270 = scmp.lt.s32.totalorder %s21, 2
        %s271 = scalar_select %p270, %s21, 2
        %s272 = smul.addr %s271, 8
        %s273 = scalar_lea.vmem %s4, %s272
        %p274 = scmp.eq.s32.totalorder %s21, 0
        // Predicated region
        $region45: #{stacking_gru_forward.1} parent=35 // pred_check
          %p275 = pneg %p274
        $region46: #{stacking_gru_forward.1} parent=35 // pred_check_branch
          %277 = sbr.rel (%p275) target = $region48
        $region47: #{stacking_gru_forward.1} parent=35 // pred_region
          %v278 = vld [vmem:[%s0] sm:$0xff]
          %279 = vst [vmem:[#allocation2] sm:$0xff] %v278
        $region48: #{stacking_gru_forward.1} parent=35 // pred_fallthru
          _
        %v280 = vld [vmem:[%s269] sm:$0xff]
        %281 = vst [vmem:[#allocation2 + $0x8] sm:$0xff] %v280
        %v282 = vld [vmem:[#allocation2] sm:$0xff]
        %v283 = vld [vmem:[#allocation2 + $0x8] sm:$0xff]
        %v284 = vld [vmem:[%s222] sm:$0xff]
        %v285 = vld [vmem:[%s222 + $0x8] sm:$0xff]
        %v286 = vld [vmem:[%s222 + $0x10] sm:$0xff]
        %v287 = vld [vmem:[%s222 + $0x18] sm:$0xff]
        %v288 = vld [vmem:[%s222 + $0x20] sm:$0xff]
        %v289 = vld [vmem:[%s222 + $0x28] sm:$0xff]
        %v290 = vld [vmem:[%s222 + $0x30] sm:$0xff]
        %v291 = vld [vmem:[%s222 + $0x38] sm:$0xff]
        %v292 = vld [vmem:[%s222 + $0x40] sm:$0xff]
        %v293 = vld [vmem:[%s222 + $0x48] sm:$0xff]
        %v294 = vld [vmem:[%s222 + $0x50] sm:$0xff]
        %v295 = vld [vmem:[%s222 + $0x58] sm:$0xff]
        %v296 = vld [vmem:[%s222 + $0x60] sm:$0xff]
        %v297 = vld [vmem:[%s222 + $0x68] sm:$0xff]
        %v298 = vld [vmem:[%s222 + $0x70] sm:$0xff]
        %v299 = vld [vmem:[%s222 + $0x78] sm:$0xff]
        %v300 = vld [vmem:[%s222 + $0x80] sm:$0xff]
        %v301 = vld [vmem:[%s222 + $0x88] sm:$0xff]
        %v302 = vld [vmem:[%s222 + $0x90] sm:$0xff]
        %v303 = vld [vmem:[%s222 + $0x98] sm:$0xff]
        %v304 = vld [vmem:[%s222 + $0xa0] sm:$0xff]
        %v305 = vld [vmem:[%s222 + $0xa8] sm:$0xff]
        %v306 = vld [vmem:[%s222 + $0xb0] sm:$0xff]
        %v307 = vld [vmem:[%s222 + $0xb8] sm:$0xff]
        %v308 = vld [vmem:[%s222 + $0xc0] sm:$0xff]
        %v309 = vld [vmem:[%s222 + $0xc8] sm:$0xff]
        %v310 = vld [vmem:[%s222 + $0xd0] sm:$0xff]
        %v311 = vld [vmem:[%s222 + $0xd8] sm:$0xff]
        %v312 = vld [vmem:[%s222 + $0xe0] sm:$0xff]
        %v313 = vld [vmem:[%s222 + $0xe8] sm:$0xff]
        %v314 = vld [vmem:[%s222 + $0xf0] sm:$0xff]
        %v315 = vld [vmem:[%s222 + $0xf8] sm:$0xff]
        %v316 = vld [vmem:[%s222 + $0x100] sm:$0xff]
        %v317 = vld [vmem:[%s222 + $0x108] sm:$0xff]
        %v318 = vld [vmem:[%s222 + $0x110] sm:$0xff]
        %v319 = vld [vmem:[%s222 + $0x118] sm:$0xff]
        %v320 = vld [vmem:[%s222 + $0x120] sm:$0xff]
        %v321 = vld [vmem:[%s222 + $0x128] sm:$0xff]
        %v322 = vld [vmem:[%s222 + $0x130] sm:$0xff]
        %v323 = vld [vmem:[%s222 + $0x138] sm:$0xff]
        %v324 = vld [vmem:[%s222 + $0x140] sm:$0xff]
        %v325 = vld [vmem:[%s222 + $0x148] sm:$0xff]
        %v326 = vld [vmem:[%s222 + $0x150] sm:$0xff]
        %v327 = vld [vmem:[%s222 + $0x158] sm:$0xff]
        %v328 = vld [vmem:[%s222 + $0x160] sm:$0xff]
        %v329 = vld [vmem:[%s222 + $0x168] sm:$0xff]
        %v330 = vld [vmem:[%s222 + $0x170] sm:$0xff]
        %v331 = vld [vmem:[%s222 + $0x178] sm:$0xff]
        %v332 = vld [vmem:[%s222 + $0x180] sm:$0xff]
        %v333 = vld [vmem:[%s222 + $0x188] sm:$0xff]
        %v334 = vld [vmem:[%s222 + $0x190] sm:$0xff]
        %v335 = vld [vmem:[%s222 + $0x198] sm:$0xff]
        %v336 = vld [vmem:[%s222 + $0x1a0] sm:$0xff]
        %v337 = vld [vmem:[%s222 + $0x1a8] sm:$0xff]
        %v338 = vld [vmem:[%s222 + $0x1b0] sm:$0xff]
        %v339 = vld [vmem:[%s222 + $0x1b8] sm:$0xff]
        %v340 = vld [vmem:[%s222 + $0x1c0] sm:$0xff]
        %v341 = vld [vmem:[%s222 + $0x1c8] sm:$0xff]
        %v342 = vld [vmem:[%s222 + $0x1d0] sm:$0xff]
        %v343 = vld [vmem:[%s222 + $0x1d8] sm:$0xff]
        %v344 = vld [vmem:[%s222 + $0x1e0] sm:$0xff]
        %v345 = vld [vmem:[%s222 + $0x1e8] sm:$0xff]
        %v346 = vld [vmem:[%s222 + $0x1f0] sm:$0xff]
        %v347 = vld [vmem:[%s222 + $0x1f8] sm:$0xff]
        %v348 = vld [vmem:[%s222 + $0x200] sm:$0xff]
        %v349 = vld [vmem:[%s222 + $0x208] sm:$0xff]
        %v350 = vld [vmem:[%s222 + $0x210] sm:$0xff]
        %v351 = vld [vmem:[%s222 + $0x218] sm:$0xff]
        %v352 = vld [vmem:[%s222 + $0x220] sm:$0xff]
        %v353 = vld [vmem:[%s222 + $0x228] sm:$0xff]
        %v354 = vld [vmem:[%s222 + $0x230] sm:$0xff]
        %v355 = vld [vmem:[%s222 + $0x238] sm:$0xff]
        %v356 = vld [vmem:[%s222 + $0x240] sm:$0xff]
        %v357 = vld [vmem:[%s222 + $0x248] sm:$0xff]
        %v358 = vld [vmem:[%s222 + $0x250] sm:$0xff]
        %v359 = vld [vmem:[%s222 + $0x258] sm:$0xff]
        %v360 = vld [vmem:[%s222 + $0x260] sm:$0xff]
        %v361 = vld [vmem:[%s222 + $0x268] sm:$0xff]
        %v362 = vld [vmem:[%s222 + $0x270] sm:$0xff]
        %v363 = vld [vmem:[%s222 + $0x278] sm:$0xff]
        %v364 = vld [vmem:[%s222 + $0x280] sm:$0xff]
        %v365 = vld [vmem:[%s222 + $0x288] sm:$0xff]
        %v366 = vld [vmem:[%s222 + $0x290] sm:$0xff]
        %v367 = vld [vmem:[%s222 + $0x298] sm:$0xff]
        %v368 = vld [vmem:[%s222 + $0x2a0] sm:$0xff]
        %v369 = vld [vmem:[%s222 + $0x2a8] sm:$0xff]
        %v370 = vld [vmem:[%s222 + $0x2b0] sm:$0xff]
        %v371 = vld [vmem:[%s222 + $0x2b8] sm:$0xff]
        %v372 = vld [vmem:[%s222 + $0x2c0] sm:$0xff]
        %v373 = vld [vmem:[%s222 + $0x2c8] sm:$0xff]
        %v374 = vld [vmem:[%s222 + $0x2d0] sm:$0xff]
        %v375 = vld [vmem:[%s222 + $0x2d8] sm:$0xff]
        %v376 = vld [vmem:[%s222 + $0x2e0] sm:$0xff]
        %v377 = vld [vmem:[%s222 + $0x2e8] sm:$0xff]
        %v378 = vld [vmem:[%s222 + $0x2f0] sm:$0xff]
        %v379 = vld [vmem:[%s222 + $0x2f8] sm:$0xff]
        %v380 = vld [vmem:[%s222 + $0x300] sm:$0xff]
        %v381 = vld [vmem:[%s222 + $0x308] sm:$0xff]
        %v382 = vld [vmem:[%s222 + $0x310] sm:$0xff]
        %v383 = vld [vmem:[%s222 + $0x318] sm:$0xff]
        %v384 = vld [vmem:[%s222 + $0x320] sm:$0xff]
        %v385 = vld [vmem:[%s222 + $0x328] sm:$0xff]
        %v386 = vld [vmem:[%s222 + $0x330] sm:$0xff]
        %v387 = vld [vmem:[%s222 + $0x338] sm:$0xff]
        %v388 = vld [vmem:[%s222 + $0x340] sm:$0xff]
        %v389 = vld [vmem:[%s222 + $0x348] sm:$0xff]
        %v390 = vld [vmem:[%s222 + $0x350] sm:$0xff]
        %v391 = vld [vmem:[%s222 + $0x358] sm:$0xff]
        %v392 = vld [vmem:[%s222 + $0x360] sm:$0xff]
        %v393 = vld [vmem:[%s222 + $0x368] sm:$0xff]
        %v394 = vld [vmem:[%s222 + $0x370] sm:$0xff]
        %v395 = vld [vmem:[%s222 + $0x378] sm:$0xff]
        %v396 = vld [vmem:[%s222 + $0x380] sm:$0xff]
        %v397 = vld [vmem:[%s222 + $0x388] sm:$0xff]
        %v398 = vld [vmem:[%s222 + $0x390] sm:$0xff]
        %v399 = vld [vmem:[%s222 + $0x398] sm:$0xff]
        %v400 = vld [vmem:[%s222 + $0x3a0] sm:$0xff]
        %v401 = vld [vmem:[%s222 + $0x3a8] sm:$0xff]
        %v402 = vld [vmem:[%s222 + $0x3b0] sm:$0xff]
        %v403 = vld [vmem:[%s222 + $0x3b8] sm:$0xff]
        %v404 = vld [vmem:[%s222 + $0x3c0] sm:$0xff]
        %v405 = vld [vmem:[%s222 + $0x3c8] sm:$0xff]
        %v406 = vld [vmem:[%s222 + $0x3d0] sm:$0xff]
        %v407 = vld [vmem:[%s222 + $0x3d8] sm:$0xff]
        %v408 = vld [vmem:[%s222 + $0x3e0] sm:$0xff]
        %v409 = vld [vmem:[%s222 + $0x3e8] sm:$0xff]
        %v410 = vld [vmem:[%s222 + $0x3f0] sm:$0xff]
        %v411 = vld [vmem:[%s222 + $0x3f8] sm:$0xff]
        %v412 = vld [vmem:[%s232] sm:$0xf]
        %v414 = vperm.slane %v412, 0
        %v415 = vperm.slane %v412, 1
        %v416 = vperm.slane %v412, 2
        %v417 = vperm.slane %v412, 3
        %422 = vmatpush.msra.mxu0 %v344
        %423 = vmatpush.msra.mxu0 %v340
        %424 = vmatpush.msra.mxu0 %v336
        %425 = vmatpush.msra.mxu0 %v332
        %426 = vmatpush.msra.mxu0 %v328
        %427 = vmatpush.msra.mxu0 %v324
        %428 = vmatpush.msra.mxu0 %v320
        %429 = vmatpush.msra.mxu0 %v316
        %430 = vmatpush.msra.mxu0 %v312
        %431 = vmatpush.msra.mxu0 %v308
        %432 = vmatpush.msra.mxu0 %v304
        %433 = vmatpush.msra.mxu0 %v300
        %434 = vmatpush.msra.mxu0 %v296
        %435 = vmatpush.msra.mxu0 %v292
        %436 = vmatpush.msra.mxu0 %v288
        %437 = vmatpush.msra.mxu0 %v284
        %438 = vmatmul.f32.gmra.mxu0 %v282
        %v439 = vpop.f32.mrf.mxu0
        %v440 = vadd.f32 %v414, %v439
        %441 = vdwg.mxu0
        %442 = vmatpush.msra.mxu0 %v408
        %443 = vmatpush.msra.mxu0 %v404
        %444 = vmatpush.msra.mxu0 %v400
        %445 = vmatpush.msra.mxu0 %v396
        %446 = vmatpush.msra.mxu0 %v392
        %447 = vmatpush.msra.mxu0 %v388
        %448 = vmatpush.msra.mxu0 %v384
        %449 = vmatpush.msra.mxu0 %v380
        %450 = vmatpush.msra.mxu0 %v376
        %451 = vmatpush.msra.mxu0 %v372
        %452 = vmatpush.msra.mxu0 %v368
        %453 = vmatpush.msra.mxu0 %v364
        %454 = vmatpush.msra.mxu0 %v360
        %455 = vmatpush.msra.mxu0 %v356
        %456 = vmatpush.msra.mxu0 %v352
        %457 = vmatpush.msra.mxu0 %v348
        %458 = vmatmul.f32.gmra.mxu0 %v283
        %v459 = vpop.f32.mrf.mxu0
        %v460 = vadd.f32 %v440, %v459
        %461 = vdwg.mxu0
        %462 = vmatpush.msra.mxu0 %v345
        %463 = vmatpush.msra.mxu0 %v341
        %464 = vmatpush.msra.mxu0 %v337
        %465 = vmatpush.msra.mxu0 %v333
        %466 = vmatpush.msra.mxu0 %v329
        %467 = vmatpush.msra.mxu0 %v325
        %468 = vmatpush.msra.mxu0 %v321
        %469 = vmatpush.msra.mxu0 %v317
        %470 = vmatpush.msra.mxu0 %v313
        %471 = vmatpush.msra.mxu0 %v309
        %472 = vmatpush.msra.mxu0 %v305
        %473 = vmatpush.msra.mxu0 %v301
        %474 = vmatpush.msra.mxu0 %v297
        %475 = vmatpush.msra.mxu0 %v293
        %476 = vmatpush.msra.mxu0 %v289
        %477 = vmatpush.msra.mxu0 %v285
        %478 = vmatmul.f32.gmra.mxu0 %v282
        %v479 = vpop.f32.mrf.mxu0
        %v480 = vadd.f32 %v415, %v479
        %481 = vdwg.mxu0
        %482 = vmatpush.msra.mxu0 %v409
        %483 = vmatpush.msra.mxu0 %v405
        %484 = vmatpush.msra.mxu0 %v401
        %485 = vmatpush.msra.mxu0 %v397
        %486 = vmatpush.msra.mxu0 %v393
        %487 = vmatpush.msra.mxu0 %v389
        %488 = vmatpush.msra.mxu0 %v385
        %489 = vmatpush.msra.mxu0 %v381
        %490 = vmatpush.msra.mxu0 %v377
        %491 = vmatpush.msra.mxu0 %v373
        %492 = vmatpush.msra.mxu0 %v369
        %493 = vmatpush.msra.mxu0 %v365
        %494 = vmatpush.msra.mxu0 %v361
        %495 = vmatpush.msra.mxu0 %v357
        %496 = vmatpush.msra.mxu0 %v353
        %497 = vmatpush.msra.mxu0 %v349
        %498 = vmatmul.f32.gmra.mxu0 %v283
        %v499 = vpop.f32.mrf.mxu0
        %v500 = vadd.f32 %v480, %v499
        %501 = vdwg.mxu0
        %502 = vmatpush.msra.mxu0 %v346
        %503 = vmatpush.msra.mxu0 %v342
        %504 = vmatpush.msra.mxu0 %v338
        %505 = vmatpush.msra.mxu0 %v334
        %506 = vmatpush.msra.mxu0 %v330
        %507 = vmatpush.msra.mxu0 %v326
        %508 = vmatpush.msra.mxu0 %v322
        %509 = vmatpush.msra.mxu0 %v318
        %510 = vmatpush.msra.mxu0 %v314
        %511 = vmatpush.msra.mxu0 %v310
        %512 = vmatpush.msra.mxu0 %v306
        %513 = vmatpush.msra.mxu0 %v302
        %514 = vmatpush.msra.mxu0 %v298
        %515 = vmatpush.msra.mxu0 %v294
        %516 = vmatpush.msra.mxu0 %v290
        %517 = vmatpush.msra.mxu0 %v286
        %518 = vmatmul.f32.gmra.mxu0 %v282
        %v519 = vpop.f32.mrf.mxu0
        %v520 = vadd.f32 %v416, %v519
        %521 = vdwg.mxu0
        %522 = vmatpush.msra.mxu0 %v410
        %523 = vmatpush.msra.mxu0 %v406
        %524 = vmatpush.msra.mxu0 %v402
        %525 = vmatpush.msra.mxu0 %v398
        %526 = vmatpush.msra.mxu0 %v394
        %527 = vmatpush.msra.mxu0 %v390
        %528 = vmatpush.msra.mxu0 %v386
        %529 = vmatpush.msra.mxu0 %v382
        %530 = vmatpush.msra.mxu0 %v378
        %531 = vmatpush.msra.mxu0 %v374
        %532 = vmatpush.msra.mxu0 %v370
        %533 = vmatpush.msra.mxu0 %v366
        %534 = vmatpush.msra.mxu0 %v362
        %535 = vmatpush.msra.mxu0 %v358
        %536 = vmatpush.msra.mxu0 %v354
        %537 = vmatpush.msra.mxu0 %v350
        %538 = vmatmul.f32.gmra.mxu0 %v283
        %v539 = vpop.f32.mrf.mxu0
        %v540 = vadd.f32 %v520, %v539
        %541 = vdwg.mxu0
        %542 = vmatpush.msra.mxu0 %v347
        %543 = vmatpush.msra.mxu0 %v343
        %544 = vmatpush.msra.mxu0 %v339
        %545 = vmatpush.msra.mxu0 %v335
        %546 = vmatpush.msra.mxu0 %v331
        %547 = vmatpush.msra.mxu0 %v327
        %548 = vmatpush.msra.mxu0 %v323
        %549 = vmatpush.msra.mxu0 %v319
        %550 = vmatpush.msra.mxu0 %v315
        %551 = vmatpush.msra.mxu0 %v311
        %552 = vmatpush.msra.mxu0 %v307
        %553 = vmatpush.msra.mxu0 %v303
        %554 = vmatpush.msra.mxu0 %v299
        %555 = vmatpush.msra.mxu0 %v295
        %556 = vmatpush.msra.mxu0 %v291
        %557 = vmatpush.msra.mxu0 %v287
        %558 = vmatmul.f32.gmra.mxu0 %v282
        %v559 = vpop.f32.mrf.mxu0
        %v560 = vadd.f32 %v417, %v559
        %561 = vdwg.mxu0
        %562 = vmatpush.msra.mxu0 %v411
        %563 = vmatpush.msra.mxu0 %v407
        %564 = vmatpush.msra.mxu0 %v403
        %565 = vmatpush.msra.mxu0 %v399
        %566 = vmatpush.msra.mxu0 %v395
        %567 = vmatpush.msra.mxu0 %v391
        %568 = vmatpush.msra.mxu0 %v387
        %569 = vmatpush.msra.mxu0 %v383
        %570 = vmatpush.msra.mxu0 %v379
        %571 = vmatpush.msra.mxu0 %v375
        %572 = vmatpush.msra.mxu0 %v371
        %573 = vmatpush.msra.mxu0 %v367
        %574 = vmatpush.msra.mxu0 %v363
        %575 = vmatpush.msra.mxu0 %v359
        %576 = vmatpush.msra.mxu0 %v355
        %577 = vmatpush.msra.mxu0 %v351
        %578 = vmatmul.f32.gmra.mxu0 %v283
        %v579 = vpop.f32.mrf.mxu0
        %v580 = vadd.f32 %v560, %v579
        %581 = vdwg.mxu0
        %v582 = vxor.u32 %v460, 2147483648
        %v583 = vmul.f32 %v582, 1.442695
        %v584 = vpow.pop %v583
        %v585 = vadd.f32 %v584, 1.0
        %v586 = vrcp.pop %v585
        %v587 = vmul.f32 %v585, %v586
        %v588 = vsub.f32 1.0, %v587
        %v589 = vmul.f32 %v586, %v588
        %v590 = vadd.f32 %v586, %v589
        %vm591 = vweird.f32 %v585
        %vm592 = vweird.f32 %v586
        %vm593 = vmor %vm591, %vm592
        %v594 = vsel %vm593, %v586, %v590
        %v595 = vand.u32 2147483647, %v585
        %vm596 = vcmp.eq.f32.partialorder %v595, 8.507059e+37
        %v597 = vand.u32 %v585, 2147483648
        %v598 = vor.u32 1.1754944e-38, %v597
        %v599 = vsel %vm596, %v598, %v594
        %v600 = vmul.f32 1.0, %v599
        %v601 = vxor.u32 %v500, 2147483648
        %v602 = vmul.f32 %v601, 1.442695
        %v603 = vpow.pop %v602
        %v604 = vadd.f32 %v603, 1.0
        %v605 = vrcp.pop %v604
        %v606 = vmul.f32 %v604, %v605
        %v607 = vsub.f32 1.0, %v606
        %v608 = vmul.f32 %v605, %v607
        %v609 = vadd.f32 %v605, %v608
        %vm610 = vweird.f32 %v604
        %vm611 = vweird.f32 %v605
        %vm612 = vmor %vm610, %vm611
        %v613 = vsel %vm612, %v605, %v609
        %v614 = vand.u32 2147483647, %v604
        %vm615 = vcmp.eq.f32.partialorder %v614, 8.507059e+37
        %v616 = vand.u32 %v604, 2147483648
        %v617 = vor.u32 1.1754944e-38, %v616
        %v618 = vsel %vm615, %v617, %v613
        %v619 = vmul.f32 1.0, %v618
        %v620 = vmul.f32 %v600, %v580
        %v621 = vadd.f32 %v540, %v620
        %v622 = vtanh.pop %v621
        %v623 = vsub.f32 1.0, %v619
        %v624 = vmul.f32 %v623, %v622
        %v625 = vmul.f32 %v619, %v280
        %v626 = vadd.f32 %v624, %v625
        %627 = vst [vmem:[%s273] sm:$0xff] %v626
        %s628 = sadd.s32 %s21, 1
        %p629 = scmp.lt.s32.totalorder %s628, 3
        // Predicated region
        $region49: #{stacking_gru_forward.1} parent=35 // pred_check
          %p630 = pneg %p629
        $region50: #{stacking_gru_forward.1} parent=35 // pred_check_branch
          %632 = sbr.rel (%p630) target = $region52
        $region51: #{stacking_gru_forward.1} parent=35 // pred_region
          %633 = vst [vmem:[#allocation2] sm:$0xff] %v626
        $region52: #{stacking_gru_forward.1} parent=35 // pred_fallthru
          _
        %p634 = scmp.lt.s32.totalorder %s21, 2
        %s635 = scalar_select %p634, %s21, 2
        %s636 = smul.addr %s635, 8
        %s637 = scalar_lea.vmem %s4, %s636
        // Predicated region
        $region53: #{stacking_gru_forward.1} parent=35 // pred_check
          %p638 = pneg %p138
        $region54: #{stacking_gru_forward.1} parent=35 // pred_check_branch
          %640 = sbr.rel (%p638) target = $region56
        $region55: #{stacking_gru_forward.1} parent=35 // pred_region
          _
        $region56: #{stacking_gru_forward.1} parent=35 // pred_fallthru
          _
      $region36: #{stacking_gru_forward.1} parent=5 // pred_fallthru
        _
      %p641 = scmp.le.s32.totalorder 2, %s16
      // Predicated region
      $region57: #{stacking_gru_forward.1} parent=5 // pred_check
        %p642 = pneg %p641
      $region58: #{stacking_gru_forward.1} parent=5 // pred_check_branch
        %644 = sbr.rel (%p642) target = $region60
      $region59: #{stacking_gru_forward.1} parent=5 // pred_region
        %s645 = ssub.s32 %s16, 2
        // Predicated region
        $region61: #{stacking_gru_forward.1} parent=59 // pred_check
          %p646 = pneg %p144
        $region62: #{stacking_gru_forward.1} parent=59 // pred_check_branch
          %648 = sbr.rel (%p646) target = $region64
        $region63: #{stacking_gru_forward.1} parent=59 // pred_region
          %p649 = scmp.lt.s32.totalorder %s22, 2
          %s650 = scalar_select %p649, %s22, 2
          %s651 = smul.addr %s650, 8
          %s652 = scalar_lea.vmem %s4, %s651
        $region64: #{stacking_gru_forward.1} parent=59 // pred_fallthru
          _
      $region60: #{stacking_gru_forward.1} parent=5 // pred_fallthru
        _
    $region6: #{stacking_gru_forward.1} parent=1 // loop_footer
      %s20 = sadd.s32 1, %s16
    $region7: #{stacking_gru_forward.1} parent=1 // loop_footer_branch
      %15 = sbr.rel target = $region3
    $region8: #{stacking_gru_forward.1} parent=1 // loop_exit
      _
    %653 = vsyncpa [#allocation4], 1
    %s654 = scalar_lea.sflag [#allocation4], 1
    %655 = vsyncpa %s654, 1
    %656 = vsyncpa [#allocation6], 1
    %s657 = scalar_lea.sflag [#allocation6], 1
    %658 = vsyncpa %s657, 1

</llo_original>
